<compile_context>
chip_gen: v6e
topology: v6e:2x2x1
jax: 0.10.0
libtpu: 0.0.40
codegen_flags: <defaults>
</compile_context>

<pallas_src>
import functools
import math

import jax
import jax.numpy as jnp
from jax.experimental import pallas as pl
from jax.experimental.pallas import tpu as pltpu

NUM_GROUPS = 32
GN_EPS = 1e-6
VMEM_LIMIT = 48 * 1024 * 1024   # explicit scoped-VMEM budget (headroom on v7x)


def _round_up(x, m):
    return (x + m - 1) // m * m


def _cparams(*sems):
    return pltpu.CompilerParams(dimension_semantics=sems,
                                vmem_limit_bytes=VMEM_LIMIT)


def _pick_tm(m, cap=512):
    """Largest multiple-of-8 divisor of m (<= cap); 0 if none (caller pads)."""
    cap = min(cap, m)
    cap -= cap % 8
    for t in range(cap, 7, -8):
        if m % t == 0:
            return t
    return 0


def _pick_hw_tile(hw, cap=4096):
    t = math.gcd(hw, cap)
    return t if t >= 8 else hw


# ----------------------------------------------------------------------------
# Matmul (+bias, +optional residual) kernels -- used for 1x1 convs / proj_out
# ----------------------------------------------------------------------------
def matmul_bias_kernel(x_ref, w_ref, b_ref, *rest, has_res):
    if has_res:
        r_ref, o_ref = rest
    else:
        (o_ref,) = rest
    acc = jnp.dot(x_ref[...], w_ref[...], preferred_element_type=jnp.float32)
    acc = acc + b_ref[...]
    if has_res:
        acc = acc + r_ref[...].astype(jnp.float32)
    o_ref[...] = acc.astype(o_ref.dtype)


def pallas_matmul_bias(x, w, b, residual=None):
    """(M, K) @ (K, N) + b (+ residual); bf16 in, f32 accumulate, bf16 out."""
    M, K = x.shape
    n_out = w.shape[1]
    TM = _pick_tm(M)
    if TM == 0:
        # TODO(synk): ragged-M fallback pads (extra HBM copy); never hit for
        # the power-of-two spatial sizes this encoder uses.
        TM = min(512, _round_up(M, 8))
        Mp = _round_up(M, TM)
        x = jnp.pad(x, ((0, Mp - M), (0, 0)))
        if residual is not None:
            residual = jnp.pad(residual, ((0, Mp - M), (0, 0)))
    else:
        Mp = M
    in_specs = [pl.BlockSpec((TM, K), lambda i: (i, 0)),
                pl.BlockSpec((K, n_out), lambda i: (0, 0)),
                pl.BlockSpec((1, n_out), lambda i: (0, 0))]
    args = [x, w, b.reshape(1, n_out).astype(jnp.float32)]
    if residual is not None:
        in_specs.append(pl.BlockSpec((TM, n_out), lambda i: (i, 0)))
        args.append(residual)
    out = pl.pallas_call(
        functools.partial(matmul_bias_kernel, has_res=residual is not None),
        out_shape=jax.ShapeDtypeStruct((Mp, n_out), jnp.bfloat16),
        grid=(Mp // TM,),
        in_specs=in_specs,
        out_specs=pl.BlockSpec((TM, n_out), lambda i: (i, 0)),
        compiler_params=_cparams("parallel"),
    )(*args)
    return out if Mp == M else out[:M]


def qkv_matmul_kernel(x_ref, w_ref, b_ref, o_ref):
    # x (TM, C) @ w (C, 3C) + b; result split into 3 lane-dense (TM, C) planes.
    acc = jnp.dot(x_ref[...], w_ref[...], preferred_element_type=jnp.float32)
    acc = acc + b_ref[...]
    C = o_ref.shape[-1]
    for j in range(3):
        o_ref[j] = acc[:, j * C:(j + 1) * C].astype(o_ref.dtype)


def pallas_qkv_proj(x, w, b):
    """Fused q|k|v projection: (M, C) @ (C, 3C) + b  ->  (3, M, C) bf16."""
    M, K = x.shape
    n3 = w.shape[1]
    C = n3 // 3
    TM = _pick_tm(M)
    if TM == 0:
        TM = min(512, _round_up(M, 8))
        Mp = _round_up(M, TM)
        x = jnp.pad(x, ((0, Mp - M), (0, 0)))
    else:
        Mp = M
    out = pl.pallas_call(
        qkv_matmul_kernel,
        out_shape=jax.ShapeDtypeStruct((3, Mp, C), jnp.bfloat16),
        grid=(Mp // TM,),
        in_specs=[pl.BlockSpec((TM, K), lambda i: (i, 0)),
                  pl.BlockSpec((K, n3), lambda i: (0, 0)),
                  pl.BlockSpec((1, n3), lambda i: (0, 0))],
        out_specs=pl.BlockSpec((3, TM, C), lambda i: (0, i, 0)),
        compiler_params=_cparams("parallel"),
    )(x, w, b.reshape(1, n3).astype(jnp.float32))
    return out if Mp == M else out[:, :M]


# ----------------------------------------------------------------------------
# 3x3 convolution: row-blocked, halo via a second block, taps folded into K
# ----------------------------------------------------------------------------
def conv3x3_kernel(a_ref, b_ref, w_ref, bias_ref, *rest, TR, Wo, stride, has_res):
    # a_ref: (TR*stride, Wp, C) input rows for this output row block
    # b_ref: next (TR*stride)-row block; only its first 2 rows (halo) are used
    # w_ref: (9*C, Cout) pre-reshaped weights; bias_ref: (1, Cout) f32
    if has_res:
        res_ref, o_ref = rest
    else:
        (o_ref,) = rest
    xin = jnp.concatenate([a_ref[...], b_ref[0:2]], axis=0)   # (TR*stride+2, Wp, C)
    C = xin.shape[-1]
    segs = []
    if stride == 1:
        for dy in range(3):
            for dx in range(3):
                segs.append(xin[dy:dy + TR, dx:dx + Wo, :])
    else:
        # stride-2 taps via parity reshape (no strided slicing anywhere)
        rows, wp = xin.shape[0], xin.shape[1]
        xr = xin.reshape(rows // 2, 2, wp // 2, 2, C)
        for dy in range(3):
            for dx in range(3):
                segs.append(xr[dy // 2:dy // 2 + TR, dy % 2,
                               dx // 2:dx // 2 + Wo, dx % 2, :])
    patch = jnp.concatenate(segs, axis=-1)          # (TR, Wo, 9C): taps folded into K
    patch = patch.reshape(TR * Wo, 9 * C)
    acc = jnp.dot(patch, w_ref[...], preferred_element_type=jnp.float32)
    acc = acc + bias_ref[...]
    if has_res:
        acc = acc + res_ref[...].astype(jnp.float32)
    o_ref[...] = acc.astype(o_ref.dtype)


def conv2d_3x3(x, p, stride=1, residual=None):
    """3x3 conv; stride=1 -> padding=1 (same); stride=2 -> F.pad(0,1,0,1) + valid."""
    N, H, W, C = x.shape
    cout = p["w"].shape[-1]
    w9 = p["w"].reshape(9 * C, cout)                # (dy, dx, cin) flattened into K
    if stride == 1:
        Ho, Wo = H, W
        pad_top, pad_left = 1, 1
        pad_right = 1
    else:
        Ho, Wo = (H - 2) // 2 + 1, (W - 2) // 2 + 1
        pad_top, pad_left = 0, 0
        pad_right = 2 * Wo + 2 - W                  # keeps Wp even for the parity trick
    TR = next((t for t in (8, 4, 2) if Ho % t == 0), Ho)   # output rows per grid step
    nrb = Ho // TR
    RB = TR * stride                                # input rows per block (sans halo)
    Hp = (nrb + 1) * RB                             # per-image rows (+1 block for halo)
    Wp = W + pad_left + pad_right
    xp = jnp.pad(x, ((0, 0), (pad_top, Hp - H - pad_top),
                     (pad_left, pad_right), (0, 0)))
    xp = xp.reshape(N * Hp, Wp, C)

    def a_map(g):
        return ((g // nrb) * (nrb + 1) + g % nrb, 0, 0)

    def b_map(g):
        return ((g // nrb) * (nrb + 1) + g % nrb + 1, 0, 0)

    in_specs = [pl.BlockSpec((RB, Wp, C), a_map),
                pl.BlockSpec((RB, Wp, C), b_map),
                pl.BlockSpec((9 * C, cout), lambda g: (0, 0)),
                pl.BlockSpec((1, cout), lambda g: (0, 0))]
    args = [xp, xp, w9, p["b"].reshape(1, cout).astype(jnp.float32)]
    if residual is not None:
        in_specs.append(pl.BlockSpec((TR * Wo, cout), lambda g: (g, 0)))
        args.append(residual.reshape(N * Ho * Wo, cout))
    out = pl.pallas_call(
        functools.partial(conv3x3_kernel, TR=TR, Wo=Wo, stride=stride,
                          has_res=residual is not None),
        out_shape=jax.ShapeDtypeStruct((N * Ho * Wo, cout), jnp.bfloat16),
        grid=(N * nrb,),
        in_specs=in_specs,
        out_specs=pl.BlockSpec((TR * Wo, cout), lambda g: (g, 0)),
        compiler_params=_cparams("parallel"),
    )(*args)
    return out.reshape(N, Ho, Wo, cout)


def conv2d_1x1(x, p, residual=None):
    N, H, W, C = x.shape
    r = None if residual is None else residual.reshape(N * H * W, -1)
    out = pallas_matmul_bias(x.reshape(N * H * W, C), p["w"], p["b"], residual=r)
    return out.reshape(N, H, W, -1)


# -------------------------- GroupNorm (two passes) ---------------------------
def gn_stats_kernel(x_ref, o_ref):
    # x: (1, THW, C); o: (1, 2, C) per-channel [sum, sumsq] accumulated over HW
    x = x_ref[0].astype(jnp.float32)
    s = jnp.sum(x, axis=0, keepdims=True)
    ss = jnp.sum(x * x, axis=0, keepdims=True)
    both = jnp.concatenate([s, ss], axis=0)          # (2, C)

    @pl.when(pl.program_id(1) == 0)
    def _():
        o_ref[...] = jnp.zeros_like(o_ref)

    o_ref[0] = o_ref[0] + both


def gn_apply_kernel(x_ref, sc_ref, sh_ref, o_ref, *, apply_silu):
    x = x_ref[0].astype(jnp.float32)
    y = x * sc_ref[0] + sh_ref[0]
    if apply_silu:
        y = y * jax.nn.sigmoid(y)
    o_ref[0] = y.astype(o_ref.dtype)


def _gn_scale_shift(stats, gamma, beta, num_groups, gs, count, eps):
    # tiny (N, C) math in plain XLA
    s, ss = stats[:, 0, :], stats[:, 1, :]
    n = s.shape[0]
    sg = s.reshape(n, num_groups, gs).sum(axis=-1)
    ssg = ss.reshape(n, num_groups, gs).sum(axis=-1)
    mean = sg / count
    var = ssg / count - mean * mean
    inv = jax.lax.rsqrt(var + eps)
    mean_c = jnp.repeat(mean, gs, axis=1)
    inv_c = jnp.repeat(inv, gs, axis=1)
    scale = gamma[None, :] * inv_c
    shift = beta[None, :] - mean_c * scale
    return scale, shift


def group_norm(x, p, apply_silu=False, num_groups=NUM_GROUPS, eps=GN_EPS):
    N, H, W, C = x.shape
    assert C % num_groups == 0
    gs = C // num_groups
    HW = H * W
    THW = _pick_hw_tile(HW)
    nt = HW // THW
    xf = x.reshape(N, HW, C)
    stats = pl.pallas_call(
        gn_stats_kernel,
        out_shape=jax.ShapeDtypeStruct((N, 2, C), jnp.float32),
        grid=(N, nt),
        in_specs=[pl.BlockSpec((1, THW, C), lambda n, t: (n, t, 0))],
        out_specs=pl.BlockSpec((1, 2, C), lambda n, t: (n, 0, 0)),
        compiler_params=_cparams("parallel", "arbitrary"),
    )(xf)
    scale, shift = _gn_scale_shift(stats, p["gamma"], p["beta"],
                                   num_groups, gs, HW * gs, eps)
    out = pl.pallas_call(
        functools.partial(gn_apply_kernel, apply_silu=apply_silu),
        out_shape=jax.ShapeDtypeStruct((N, HW, C), jnp.bfloat16),
        grid=(N, nt),
        in_specs=[pl.BlockSpec((1, THW, C), lambda n, t: (n, t, 0)),
                  pl.BlockSpec((1, 1, C), lambda n, t: (n, 0, 0)),
                  pl.BlockSpec((1, 1, C), lambda n, t: (n, 0, 0))],
        out_specs=pl.BlockSpec((1, THW, C), lambda n, t: (n, t, 0)),
        compiler_params=_cparams("parallel", "parallel"),
    )(xf, scale.reshape(N, 1, C), shift.reshape(N, 1, C))
    return out.reshape(N, H, W, C)


# ------------------------------- Attention -----------------------------------
def attention_kernel(q_ref, k_ref, v_ref, o_ref, *, heads, scale):
    # q: (1, TQ, C), k/v: (1, T, C); heads looped inside, per-head direct store
    C = o_ref.shape[-1]
    D = C // heads
    for h in range(heads):
        q = q_ref[0, :, h * D:(h + 1) * D]
        k = k_ref[0, :, h * D:(h + 1) * D]
        v = v_ref[0, :, h * D:(h + 1) * D]
        s = jnp.einsum("qd,kd->qk", q, k,
                       preferred_element_type=jnp.float32) * scale
        m = jnp.max(s, axis=-1, keepdims=True)
        p = jnp.exp(s - m)
        l = jnp.sum(p, axis=-1, keepdims=True)
        o = jnp.dot(p.astype(v.dtype), v, preferred_element_type=jnp.float32)
        o = o * (1.0 / l)
        o_ref[0, :, h * D:(h + 1) * D] = o.astype(o_ref.dtype)


def pallas_attention(q, k, v, heads):
    # q, k, v: (B, T, C) bf16 (head-major channel layout); returns (B, T, C)
    B, T, C = q.shape
    D = C // heads
    scale = 1.0 / math.sqrt(D)       # F.scaled_dot_product_attention default
    TQ = next((t for t in (512, 256, 128) if T % t == 0), T)
    nq = T // TQ
    return pl.pallas_call(
        functools.partial(attention_kernel, heads=heads, scale=scale),
        out_shape=jax.ShapeDtypeStruct((B, T, C), jnp.bfloat16),
        grid=(B, nq),
        in_specs=[pl.BlockSpec((1, TQ, C), lambda b, i: (b, i, 0)),
                  pl.BlockSpec((1, T, C), lambda b, i: (b, 0, 0)),
                  pl.BlockSpec((1, T, C), lambda b, i: (b, 0, 0))],
        out_specs=pl.BlockSpec((1, TQ, C), lambda b, i: (b, i, 0)),
        compiler_params=_cparams("parallel", "parallel"),
    )(q, k, v)


# ----------------------------------------------------------------------------
# Layer wrappers
# ----------------------------------------------------------------------------
def resnet_block(x, p):
    h = group_norm(x, p["norm1"], apply_silu=True)
    h = conv2d_3x3(h, p["conv1"])
    h = group_norm(h, p["norm2"], apply_silu=True)
    sc = x
    if "nin_shortcut" in p:
        sc = conv2d_1x1(x, p["nin_shortcut"])
    # residual add fused into conv2's epilogue
    return conv2d_3x3(h, p["conv2"], residual=sc)


def multi_head_attn_block(x, p, head_size):
    B, H, W, C = x.shape
    T = H * W
    kv = group_norm(x, p["norm1"], apply_silu=False)
    # y is None in this forward -> q path also uses norm1(x); fuse q/k/v proj.
    wqkv = jnp.concatenate([p["q"]["w"], p["k"]["w"], p["v"]["w"]], axis=1)
    bqkv = jnp.concatenate([p["q"]["b"], p["k"]["b"], p["v"]["b"]])
    qkv = pallas_qkv_proj(kv.reshape(B * T, C), wqkv, bqkv)     # (3, B*T, C)
    q = qkv[0].reshape(B, T, C)
    k = qkv[1].reshape(B, T, C)
    v = qkv[2].reshape(B, T, C)
    att = pallas_attention(q, k, v, head_size)
    # proj_out with the skip connection fused into the matmul epilogue
    out = pallas_matmul_bias(att.reshape(B * T, C), p["proj_out"]["w"],
                             p["proj_out"]["b"], residual=x.reshape(B * T, C))
    return out.reshape(B, H, W, C)


def downsample(x, p):
    return conv2d_3x3(x, p["conv"], stride=2)


# ----------------------------------------------------------------------------
# Deterministic parameter initialization (shapes follow the PyTorch __init__)
# ----------------------------------------------------------------------------
class _KeyGen:
    def __init__(self, key):
        self.key = key
        self.i = 0

    def __call__(self):
        self.i += 1
        return jax.random.fold_in(self.key, self.i)


def _normal(key, shape, scale=0.05):
    return jax.random.normal(key, shape, jnp.float32) * scale


def _conv3_p(kg, cin, cout):
    return {"w": _normal(kg(), (3, 3, cin, cout)).astype(jnp.bfloat16),
            "b": _normal(kg(), (cout,))}


def _conv1_p(kg, cin, cout):
    return {"w": _normal(kg(), (cin, cout)).astype(jnp.bfloat16),
            "b": _normal(kg(), (cout,))}


def _gn_p(c):
    return {"gamma": jnp.ones((c,), jnp.float32),
            "beta": jnp.zeros((c,), jnp.float32)}


def _resblock_p(kg, cin, cout):
    p = {"norm1": _gn_p(cin), "conv1": _conv3_p(kg, cin, cout),
         "norm2": _gn_p(cout), "conv2": _conv3_p(kg, cout, cout)}
    if cin != cout:
        p["nin_shortcut"] = _conv1_p(kg, cin, cout)
    return p


def _attn_p(kg, c):
    return {"norm1": _gn_p(c), "q": _conv1_p(kg, c, c), "k": _conv1_p(kg, c, c),
            "v": _conv1_p(kg, c, c), "proj_out": _conv1_p(kg, c, c)}


def init_multi_head_encoder(key, cfg):
    kg = _KeyGen(key)
    ch, ch_mult, nrb = cfg["ch"], cfg["ch_mult"], cfg["num_res_blocks"]
    num_levels = len(ch_mult)
    params = {"conv_in": _conv3_p(kg, cfg["in_channels"], ch)}
    block_out = ch
    curr_res = cfg["resolution"]
    down = []
    for li, mult in enumerate(ch_mult):
        block_in, block_out = block_out, ch * mult
        blocks = [_resblock_p(kg, block_in, block_out)]
        blocks += [_resblock_p(kg, block_out, block_out) for _ in range(nrb - 1)]
        attns = ([_attn_p(kg, block_out) for _ in range(nrb)]
                 if curr_res in cfg["attn_resolutions"] else [])
        lev = {"block": blocks, "attn": attns}
        if li != num_levels - 1:
            lev["downsample"] = {"conv": _conv3_p(kg, block_out, block_out)}
            curr_res //= 2
        down.append(lev)
    params["down"] = down
    if cfg["enable_mid"]:
        params["mid"] = {"block_1": _resblock_p(kg, block_out, block_out),
                         "attn_1": _attn_p(kg, block_out),
                         "block_2": _resblock_p(kg, block_out, block_out)}
    params["norm_out"] = _gn_p(block_out)
    params["conv_out"] = _conv3_p(kg, block_out, cfg["z_channels"])
    return params


# ----------------------------------------------------------------------------
# Encoder forward (mirrors MultiHeadEncoder.forward with shape_key=False)
# ----------------------------------------------------------------------------
def multi_head_encoder_forward(params, x_nchw, cfg):
    num_levels = len(cfg["ch_mult"])
    nrb = cfg["num_res_blocks"]
    head_size = cfg["head_size"]

    x = jnp.transpose(x_nchw, (0, 2, 3, 1)).astype(jnp.bfloat16)  # NCHW->NHWC
    hs = {}
    h = conv2d_3x3(x, params["conv_in"])
    hs["in"] = h
    for i_level in range(num_levels):
        lev = params["down"][i_level]
        for i_block in range(nrb):
            h = resnet_block(h, lev["block"][i_block])
            if len(lev["attn"]) > 0:
                h = multi_head_attn_block(h, lev["attn"][i_block], head_size)
        if i_level != num_levels - 1:
            hs["block_" + str(i_level)] = h
            h = downsample(h, lev["downsample"])
    if cfg["enable_mid"]:
        h = resnet_block(h, params["mid"]["block_1"])
        hs["block_" + str(num_levels - 1) + "_atten"] = h
        h = multi_head_attn_block(h, params["mid"]["attn_1"], head_size)
        h = resnet_block(h, params["mid"]["block_2"])
        hs["mid_atten"] = h
    h = group_norm(h, params["norm_out"], apply_silu=True)
    h = conv2d_3x3(h, params["conv_out"])
    hs["out"] = h
    # back to NCHW float32 to match the PyTorch module outputs
    return {k: jnp.transpose(v, (0, 3, 1, 2)).astype(jnp.float32)
            for k, v in hs.items()}


# ----------------------------------------------------------------------------
if __name__ == "__main__":
    cfg = dict(
        ch=32,
        ch_mult=(1, 2),
        num_res_blocks=2,
        attn_resolutions=(8,),
        in_channels=3,
        resolution=16,
        z_channels=32,
        enable_mid=True,
        head_size=2,
    )
    key = jax.random.PRNGKey(0)
    pkey, xkey, ckey = jax.random.split(key, 3)
    params = init_multi_head_encoder(pkey, cfg)
    x = jax.random.normal(xkey, (2, cfg["in_channels"], cfg["resolution"],
                                 cfg["resolution"]), jnp.float32)

    # -------- micro numeric sanity checks (loose bf16 tolerances) ----------
    TOL = 0.15
    k1, k2, k3, k4, k5, k6, k7, k8 = jax.random.split(ckey, 8)

    # matmul + bias
    xm = jax.random.normal(k5, (64, 32), jnp.float32)
    wm = jax.random.normal(k6, (32, 48), jnp.float32) * 0.1
    bm = jax.random.normal(k7, (48,), jnp.float32) * 0.1
    got = pallas_matmul_bias(xm.astype(jnp.bfloat16), wm.astype(jnp.bfloat16), bm)
    err = float(jnp.max(jnp.abs(got.astype(jnp.float32) - (xm @ wm + bm))))
    assert err < TOL, ("matmul mismatch", err)

    # 3x3 conv (stride 1 and 2)
    xc = jax.random.normal(k1, (1, 8, 8, 32), jnp.float32)
    wc = jax.random.normal(k2, (3, 3, 32, 32), jnp.float32) * 0.05
    bc = jax.random.normal(k3, (32,), jnp.float32) * 0.05

    def conv_ref(xf, wf, bf, stride):
        if stride == 1:
            xp = jnp.pad(xf, ((0, 0), (1, 1), (1, 1), (0, 0)))
        else:
            xp = jnp.pad(xf, ((0, 0), (0, 1), (0, 1), (0, 0)))
        out = jax.lax.conv_general_dilated(
            xp, wf, (stride, stride), "VALID",
            dimension_numbers=("NHWC", "HWIO", "NHWC"))
        return out + bf.reshape(1, 1, 1, -1)

    pconv = {"w": wc.astype(jnp.bfloat16), "b": bc}
    for s_ in (1, 2):
        got = conv2d_3x3(xc.astype(jnp.bfloat16), pconv, stride=s_)
        ref = conv_ref(xc, wc, bc, s_)
        assert got.shape == ref.shape, (got.shape, ref.shape)
        err = float(jnp.max(jnp.abs(got.astype(jnp.float32) - ref)))
        assert err < TOL, ("conv3x3 stride %d mismatch" % s_, err)

    # GroupNorm + SiLU
    gp = {"gamma": jnp.ones((32,), jnp.float32) * 1.3,
          "beta": jnp.full((32,), 0.2, jnp.float32)}
    got = group_norm(xc.astype(jnp.bfloat16), gp, apply_silu=True)
    xg = xc.reshape(1, 64, NUM_GROUPS, 1)
    mu = xg.mean(axis=(1, 3), keepdims=True)
    var = ((xg - mu) ** 2).mean(axis=(1, 3), keepdims=True)
    yr = ((xg - mu) * jax.lax.rsqrt(var + GN_EPS)).reshape(1, 8, 8, 32)
    yr = yr * gp["gamma"] + gp["beta"]
    yr = yr * jax.nn.sigmoid(yr)
    err = float(jnp.max(jnp.abs(got.astype(jnp.float32) - yr)))
    assert err < TOL, ("groupnorm mismatch", err)

    # multi-head attention
    q_t = jax.random.normal(k4, (2, 16, 32), jnp.float32)
    k_t = jax.random.normal(k8, (2, 16, 32), jnp.float32)
    v_t = jax.random.normal(jax.random.fold_in(k8, 1), (2, 16, 32), jnp.float32)
    got = pallas_attention(q_t.astype(jnp.bfloat16), k_t.astype(jnp.bfloat16),
                           v_t.astype(jnp.bfloat16), heads=2)

    def _sh(t):
        return t.reshape(2, 16, 2, 16).transpose(0, 2, 1, 3)

    qh, kh, vh = _sh(q_t), _sh(k_t), _sh(v_t)
    sc_ = jnp.einsum("bhqd,bhkd->bhqk", qh, kh) / math.sqrt(16)
    pr_ = jax.nn.softmax(sc_, axis=-1)
    oref = jnp.einsum("bhqk,bhkd->bhqd", pr_, vh).transpose(0, 2, 1, 3)
    oref = oref.reshape(2, 16, 32)
    err = float(jnp.max(jnp.abs(got.astype(jnp.float32) - oref)))
    assert err < TOL, ("attention mismatch", err)

    # ----------------------------- full forward -----------------------------
    fwd = jax.jit(functools.partial(multi_head_encoder_forward, cfg=cfg))
    hs = fwd(params, x)
    hs = jax.block_until_ready(hs)

    expected = {
        "in": (2, 32, 16, 16),
        "block_0": (2, 32, 16, 16),
        "block_1_atten": (2, 64, 8, 8),
        "mid_atten": (2, 64, 8, 8),
        "out": (2, 32, 8, 8),
    }
    for name, shp in expected.items():
        assert hs[name].shape == shp, (name, hs[name].shape, shp)
        assert bool(jnp.all(jnp.isfinite(hs[name]))), name
    print("KERNEL_OK")
</pallas_src>

<mosaic_0001>
module attributes {stable_mosaic.version = 11 : i64} {
  func.func @matmul_bias_kernel(%arg0: i32, %arg1: memref<64x32xbf16, #tpu.memory_space<vmem>>, %arg2: memref<32x48xbf16, #tpu.memory_space<vmem>>, %arg3: memref<1x48xf32, #tpu.memory_space<vmem>>, %arg4: memref<64x48xbf16, #tpu.memory_space<vmem>>) attributes {dimension_semantics = [#tpu.dimension_semantics<parallel>], iteration_bounds = array<i64: 1>, scalar_prefetch = 0 : i64, scratch_operands = 0 : i64, tpu.core_type = #tpu.core_type<tc>, window_params = [{transform_indices = @transform_0, window_bounds = array<i64: 64, 32>}, {pipeline_mode = #tpu.pipeline_mode<synchronous>, transform_indices = @transform_1, window_bounds = array<i64: 32, 48>}, {pipeline_mode = #tpu.pipeline_mode<synchronous>, transform_indices = @transform_2, window_bounds = array<i64: 1, 48>}, {transform_indices = @transform_3, window_bounds = array<i64: 64, 48>}]} {
    %c0 = arith.constant 0 : index
    %c0_0 = arith.constant 0 : index
    %0 = vector.load %arg1[%c0, %c0_0] : memref<64x32xbf16, #tpu.memory_space<vmem>>, vector<64x32xbf16>
    %c0_1 = arith.constant 0 : index
    %c0_2 = arith.constant 0 : index
    %1 = vector.load %arg2[%c0_1, %c0_2] : memref<32x48xbf16, #tpu.memory_space<vmem>>, vector<32x48xbf16>
    %cst = arith.constant dense<0.000000e+00> : vector<64x48xf32>
    %2 = tpu.matmul %0, %1, %cst {dimension_numbers = #tpu.dot_dimension_numbers<[1], [0], [0], [1], [0, 0, 1, 1], [], []>} : vector<64x32xbf16>, vector<32x48xbf16>, vector<64x48xf32> -> vector<64x48xf32>
    %c0_3 = arith.constant 0 : index
    %c0_4 = arith.constant 0 : index
    %3 = vector.load %arg3[%c0_3, %c0_4] : memref<1x48xf32, #tpu.memory_space<vmem>>, vector<1x48xf32>
    %4 = vector.broadcast %3 : vector<1x48xf32> to vector<64x48xf32>
    %5 = arith.addf %2, %4 : vector<64x48xf32>
    %6 = arith.truncf %5 : vector<64x48xf32> to vector<64x48xbf16>
    %c0_5 = arith.constant 0 : index
    %c0_6 = arith.constant 0 : index
    %7 = vector.load %arg4[%c0_5, %c0_6] : memref<64x48xbf16, #tpu.memory_space<vmem>>, vector<64x48xbf16>
    tpu.vector_store %arg4[%c0_5, %c0_6], %6 {strides = array<i32>} : memref<64x48xbf16, #tpu.memory_space<vmem>>, vector<64x48xbf16>,
    return
  }
  func.func @transform_0(%arg0: i32) -> (i32, i32) {
    %c0_i32 = arith.constant 0 : i32
    %c0_i32_0 = arith.constant 0 : i32
    return %arg0, %c0_i32 : i32, i32
  }
  func.func @transform_1(%arg0: i32) -> (i32, i32) {
    %c0_i32 = arith.constant 0 : i32
    %c0_i32_0 = arith.constant 0 : i32
    %c0_i32_1 = arith.constant 0 : i32
    return %c0_i32, %c0_i32_0 : i32, i32
  }
  func.func @transform_2(%arg0: i32) -> (i32, i32) {
    %c0_i32 = arith.constant 0 : i32
    %c0_i32_0 = arith.constant 0 : i32
    %c0_i32_1 = arith.constant 0 : i32
    return %c0_i32, %c0_i32_0 : i32, i32
  }
  func.func @transform_3(%arg0: i32) -> (i32, i32) {
    %c0_i32 = arith.constant 0 : i32
    %c0_i32_0 = arith.constant 0 : i32
    return %arg0, %c0_i32 : i32, i32
  }
}

</mosaic_0001>

<llo_original>
// kernel: tpu_custom_call.1
$region0: #{tpu_custom_call.1}
  #allocation0 [shape = 'u32[]', space=smem, size = 0x4, offset = 0x4, fixed_abs, tag = 'smem constant byte address 0x4 - core index']
  #allocation1 [shape = 'u32[144,128]{1,0:T(1,128)}', space=vmem, size = 0x12000, scoped, tag = 'internal scratch']
  %s0 = inlined_call_operand.vmem [shape: bf16[64,32], index: 0, kind: input, shape index: {}]
  %s1 = inlined_call_operand.vmem [shape: bf16[32,48], index: 1, kind: input, shape index: {}]
  %s2 = inlined_call_operand.vmem [shape: f32[1,48], index: 2, kind: input, shape index: {}]
  %s3 = inlined_call_operand.vmem [shape: bf16[64,48], index: 3, kind: output, shape index: {}]
  %s4 = sld [smem:[#allocation0]]
  $region22: #{tpu_custom_call.1} parent=0
    _
  %s6 = ssub.s32 1, %s4
  %s7 = scalar_select 0, %s6, %s4
  // Predicated region
  $region2: #{tpu_custom_call.1} parent=0 // pred_check
    _
  $region3: #{tpu_custom_call.1} parent=0 // pred_check_branch
    %9 = sbr.rel (0) target = $region5
  $region4: #{tpu_custom_call.1} parent=0 // pred_region
    _
  $region5: #{tpu_custom_call.1} parent=0 // pred_fallthru
    _
  // Predicated region
  $region6: #{tpu_custom_call.1} parent=0 // pred_check
    _
  $region7: #{tpu_custom_call.1} parent=0 // pred_check_branch
    %11 = sbr.rel (0) target = $region9
  $region8: #{tpu_custom_call.1} parent=0 // pred_region
    _
  $region9: #{tpu_custom_call.1} parent=0 // pred_fallthru
    _
  // Predicated region
  $region10: #{tpu_custom_call.1} parent=0 // pred_check
    _
  $region11: #{tpu_custom_call.1} parent=0 // pred_check_branch
    %13 = sbr.rel (0) target = $region13
  $region12: #{tpu_custom_call.1} parent=0 // pred_region
    _
  $region13: #{tpu_custom_call.1} parent=0 // pred_fallthru
    _
  %v15 = vld [vmem:[%s0] sm:$0xf]
  %v16 = vld [vmem:[%s0 + $0x4] sm:$0xf]
  %v17 = vld [vmem:[%s0 + $0x8] sm:$0xf]
  %v18 = vld [vmem:[%s0 + $0xc] sm:$0xf]
  %v19 = vld [vmem:[%s0 + $0x10] sm:$0xf]
  %v20 = vld [vmem:[%s0 + $0x14] sm:$0xf]
  %v21 = vld [vmem:[%s0 + $0x18] sm:$0xf]
  %v22 = vld [vmem:[%s0 + $0x1c] sm:$0xf]
  %v23 = vld [vmem:[%s1] sm:$0xf]
  %v24 = vld [vmem:[%s1 + $0x4] sm:$0xf]
  %v25 = vld [vmem:[%s1 + $0x8] sm:$0xf]
  %v26 = vld [vmem:[%s1 + $0xc] sm:$0xf]
  %v27 = vld [vmem:[%s2] sm:$0x1]
  %v29 = vlaneseq
  %v30 = vshrl.u32 %v29, 7
  %v31 = vsub.s32 0, %v30
  %v32 = vrot.slane %v27, %v31
  %v42 = vunpack.c.l.b16 %v15
  %v43 = vunpack.c.l.b16 %v16
  %v44 = vunpack.c.l.b16 %v17
  %v45 = vunpack.c.l.b16 %v18
  %v46 = vunpack.c.l.b16 %v19
  %v47 = vunpack.c.l.b16 %v20
  %v48 = vunpack.c.l.b16 %v21
  %v49 = vunpack.c.l.b16 %v22
  %v50 = vpack.c.b16 %v43, %v42
  %v51 = vpack.c.b16 %v45, %v44
  %v52 = vpack.c.b16 %v47, %v46
  %v53 = vpack.c.b16 %v49, %v48
  %v58 = vunpack.c.l.b16 %v23
  %v59 = vunpack.c.l.b16 %v24
  %v60 = vunpack.c.l.b16 %v25
  %v61 = vunpack.c.l.b16 %v26
  %v62 = vpack.c.b16 %v59, %v58
  %v63 = vpack.c.b16 %v61, %v60
  %vm66 = vcmask 261120
  %v68 = vsel %vm66, %v50, 0
  %v71 = vsel %vm66, %v51, 0
  %v74 = vsel %vm66, %v52, 0
  %v77 = vsel %vm66, %v53, 0
  %79 = vmatprep.subr.bf16.mxu0 0
  %80 = vmatpush1.bf16.msra.mxu0 0
  %81 = vmatprep.subr.bf16.mxu0 0
  %82 = vmatpush1.bf16.msra.mxu0 0
  %83 = vmatprep.subr.bf16.mxu0 0
  %84 = vmatpush1.bf16.msra.mxu0 0
  %85 = vmatprep.subr.bf16.mxu0 0
  %86 = vmatpush1.bf16.msra.mxu0 0
  %87 = vmatprep.subr.bf16.mxu0 0
  %88 = vmatpush1.bf16.msra.mxu0 0
  %89 = vmatprep.subr.bf16.mxu0 0
  %90 = vmatpush1.bf16.msra.mxu0 0
  %91 = vmatprep.subr.bf16.mxu0 0
  %92 = vmatpush1.bf16.msra.mxu0 %v63
  %93 = vmatprep.subr.bf16.mxu0 0
  %94 = vmatpush1.bf16.msra.mxu0 %v62
  %95 = vmatprep.subr.bf16.mxu0 0
  %96 = vmatpush2.bf16.msra.mxu0 0
  %97 = vmatprep.subr.bf16.mxu0 0
  %98 = vmatpush2.bf16.msra.mxu0 0
  %99 = vmatprep.subr.bf16.mxu0 0
  %100 = vmatpush2.bf16.msra.mxu0 0
  %101 = vmatprep.subr.bf16.mxu0 0
  %102 = vmatpush2.bf16.msra.mxu0 0
  %103 = vmatprep.subr.bf16.mxu0 0
  %104 = vmatpush2.bf16.msra.mxu0 0
  %105 = vmatprep.subr.bf16.mxu0 0
  %106 = vmatpush2.bf16.msra.mxu0 0
  %107 = vmatprep.subr.bf16.mxu0 0
  %108 = vmatpush2.bf16.msra.mxu0 0
  %109 = vmatprep.subr.bf16.mxu0 0
  %110 = vmatpush2.bf16.msra.mxu0 0
  %111 = vmatprep.mubr.bf16.mxu0 0
  %112 = vmatmul.mubr.bf16.gmra.mxu0 %v68
  %v113 = vpop.f32.mrf.mxu0
  %v114 = vadd.f32 %v32, %v113
  %v115 = vpop.f32.mrf.mxu0
  %v116 = vpop.f32.mrf.mxu0
  %v117 = vadd.f32 %v32, %v116
  %v118 = vpop.f32.mrf.mxu0
  %119 = vmatprep.mubr.bf16.mxu0 0
  %120 = vmatmul.mubr.bf16.gmra.mxu0 %v71
  %v121 = vpop.f32.mrf.mxu0
  %v122 = vadd.f32 %v32, %v121
  %v123 = vpop.f32.mrf.mxu0
  %v124 = vpop.f32.mrf.mxu0
  %v125 = vadd.f32 %v32, %v124
  %v126 = vpop.f32.mrf.mxu0
  %127 = vmatprep.mubr.bf16.mxu0 0
  %128 = vmatmul.mubr.bf16.gmra.mxu0 %v74
  %v129 = vpop.f32.mrf.mxu0
  %v130 = vadd.f32 %v32, %v129
  %v131 = vpop.f32.mrf.mxu0
  %v132 = vpop.f32.mrf.mxu0
  %v133 = vadd.f32 %v32, %v132
  %v134 = vpop.f32.mrf.mxu0
  %135 = vmatprep.mubr.bf16.mxu0 0
  %136 = vmatmul.mubr.bf16.gmra.mxu0 %v77
  %v137 = vpop.f32.mrf.mxu0
  %v138 = vadd.f32 %v32, %v137
  %v139 = vpop.f32.mrf.mxu0
  %v140 = vpop.f32.mrf.mxu0
  %v141 = vadd.f32 %v32, %v140
  %v142 = vpop.f32.mrf.mxu0
  %143 = vdwg.mxu0
  %v144 = vpack.c.bf16 %v117, %v114
  %v145 = vpack.c.bf16 %v125, %v122
  %v146 = vpack.c.bf16 %v133, %v130
  %v147 = vpack.c.bf16 %v141, %v138
  %v152 = vunpack.c.l.b16 %v144
  %v153 = vunpack.c.h.b16 %v144
  %v154 = vunpack.c.l.b16 %v145
  %v155 = vunpack.c.h.b16 %v145
  %v156 = vunpack.c.l.b16 %v146
  %v157 = vunpack.c.h.b16 %v146
  %v158 = vunpack.c.l.b16 %v147
  %v159 = vunpack.c.h.b16 %v147
  %v160 = vpack.c.b16 %v152, %v152
  %v161 = vpack.c.b16 %v153, %v153
  %v162 = vpack.c.b16 %v154, %v154
  %v163 = vpack.c.b16 %v155, %v155
  %v164 = vpack.c.b16 %v156, %v156
  %v165 = vpack.c.b16 %v157, %v157
  %v166 = vpack.c.b16 %v158, %v158
  %v167 = vpack.c.b16 %v159, %v159
  %vm176 = vcmask 388096
  %177 = vst.msk [vmem:[%s3] sm:$0xf] %vm176, %v160
  %178 = vst.msk [vmem:[%s3 + $0x4] sm:$0xf] %vm176, %v161
  %179 = vst.msk [vmem:[%s3 + $0x8] sm:$0xf] %vm176, %v162
  %180 = vst.msk [vmem:[%s3 + $0xc] sm:$0xf] %vm176, %v163
  %181 = vst.msk [vmem:[%s3 + $0x10] sm:$0xf] %vm176, %v164
  %182 = vst.msk [vmem:[%s3 + $0x14] sm:$0xf] %vm176, %v165
  %183 = vst.msk [vmem:[%s3 + $0x18] sm:$0xf] %vm176, %v166
  %184 = vst.msk [vmem:[%s3 + $0x1c] sm:$0xf] %vm176, %v167
  // Predicated region
  $region14: #{tpu_custom_call.1} parent=0 // pred_check
    _
  $region15: #{tpu_custom_call.1} parent=0 // pred_check_branch
    %186 = sbr.rel (0) target = $region17
  $region16: #{tpu_custom_call.1} parent=0 // pred_region
    _
  $region17: #{tpu_custom_call.1} parent=0 // pred_fallthru
    _
  // Predicated region
  $region18: #{tpu_custom_call.1} parent=0 // pred_check
    _
  $region19: #{tpu_custom_call.1} parent=0 // pred_check_branch
    %188 = sbr.rel (0) target = $region21
  $region20: #{tpu_custom_call.1} parent=0 // pred_region
    _
  $region21: #{tpu_custom_call.1} parent=0 // pred_fallthru
    _

</llo_original>
